<compile_context>
chip_gen: v5e
topology: v5e:2x2
jax: 0.10.0
libtpu: 0.0.40
codegen_flags: <defaults>
</compile_context>

<pallas_src>
import functools
import math

import jax
import jax.numpy as jnp
from jax.experimental import pallas as pl
from jax.experimental.pallas import tpu as pltpu


# ----------------------------------------------------------------------------
# pe buffer construction (mirrors PositionalEncoding.__init__)
# ----------------------------------------------------------------------------
def make_pe_table(d_model: int, max_len: int = 5000) -> jax.Array:
    position = jnp.arange(0, max_len, dtype=jnp.float32)[:, None]          # (max_len, 1)
    div_term = jnp.exp(
        jnp.arange(0, d_model, 2, dtype=jnp.float32) * (-math.log(10000.0) / d_model)
    )                                                                       # (d_model//2,)
    pe = jnp.zeros((max_len, d_model), dtype=jnp.float32)
    pe = pe.at[:, 0::2].set(jnp.sin(position * div_term))
    pe = pe.at[:, 1::2].set(jnp.cos(position * div_term))
    # torch: pe.unsqueeze(0).transpose(0, 1) -> (max_len, 1, d_model)
    return pe[:, None, :]


# ----------------------------------------------------------------------------
# Pallas kernels
# ----------------------------------------------------------------------------
def _pe_add_kernel(x_ref, pe_ref, o_ref):
    # x block: (TS, B, D); pe block: (TS, 1, D) -> broadcast add over batch.
    o_ref[...] = (x_ref[...] + pe_ref[...]).astype(o_ref.dtype)


def _hash_uniform_bits(shape, seed_scalar, s_offset):
    """Counter-based uint32 bits, unique per global (s, b, d) element."""
    ts, b, d = shape
    s_idx = jax.lax.broadcasted_iota(jnp.int32, shape, 0) + s_offset
    b_idx = jax.lax.broadcasted_iota(jnp.int32, shape, 1)
    d_idx = jax.lax.broadcasted_iota(jnp.int32, shape, 2)
    flat = (s_idx * b + b_idx) * d + d_idx
    h = flat.astype(jnp.uint32) + seed_scalar.astype(jnp.uint32) * jnp.uint32(0x9E3779B9)
    # murmur3 finalizer
    h = h ^ (h >> 16)
    h = h * jnp.uint32(0x85EBCA6B)
    h = h ^ (h >> 13)
    h = h * jnp.uint32(0xC2B2AE35)
    h = h ^ (h >> 16)
    return h


def _pe_add_dropout_kernel(seed_ref, x_ref, pe_ref, o_ref, *, p, tile_s):
    # Training-mode dropout: keep with prob (1-p), scale kept values by 1/(1-p).
    y = (x_ref[...] + pe_ref[...]).astype(jnp.float32)
    s_offset = pl.program_id(0) * tile_s                      # per-tile unique stream
    bits = _hash_uniform_bits(y.shape, seed_ref[0], s_offset)
    threshold = jnp.uint32(min(int(round(p * (2.0 ** 32))), 2 ** 32 - 1))
    keep = bits >= threshold                                   # P(drop) ~= p
    scale = jnp.float32(1.0 / (1.0 - p))
    o_ref[...] = jnp.where(keep, y * scale, jnp.zeros_like(y)).astype(o_ref.dtype)


# ----------------------------------------------------------------------------
# Wrapper
# ----------------------------------------------------------------------------
def _choose_tile_s(S, B, D, itemsize, target_bytes=2 << 20):
    """~2 MiB per x tile; double-buffered x/pe/out stays well under scoped VMEM."""
    ts = max(1, int(target_bytes) // max(1, B * D * itemsize))
    return int(min(S, ts))


def positional_encoding(x, pe_table, *, p=0.1, training=False, seed=0, tile_s=None):
    """x: (S, B, D).  pe_table: (max_len, 1, D)."""
    S, B, D = x.shape
    pe = pe_table[:S].astype(x.dtype)          # (S, 1, D); broadcast over B in-kernel

    if tile_s is None:
        tile_s = _choose_tile_s(S, B, D, x.dtype.itemsize)
    tile_s = int(min(tile_s, S))
    grid = (pl.cdiv(S, tile_s),)

    # index_maps take (grid_idx, *scalar_prefetch_refs); *_ absorbs the latter.
    x_spec = pl.BlockSpec((tile_s, B, D), lambda i, *_: (i, 0, 0))
    pe_spec = pl.BlockSpec((tile_s, 1, D), lambda i, *_: (i, 0, 0))
    out_spec = pl.BlockSpec((tile_s, B, D), lambda i, *_: (i, 0, 0))

    compiler_params = pltpu.CompilerParams(dimension_semantics=("parallel",))

    if (not training) or p <= 0.0:
        # NOTE: could pass input_output_aliases={0: 0} if the caller donates x.
        return pl.pallas_call(
            _pe_add_kernel,
            out_shape=jax.ShapeDtypeStruct((S, B, D), x.dtype),
            grid=grid,
            in_specs=[x_spec, pe_spec],
            out_specs=out_spec,
            compiler_params=compiler_params,
        )(x, pe)

    if p >= 1.0:
        # nn.Dropout(p=1.0) zeros everything; avoid uint32 threshold overflow.
        return jnp.zeros_like(x)

    seed_arr = jnp.asarray([seed], dtype=jnp.int32)
    kernel = functools.partial(_pe_add_dropout_kernel, p=float(p), tile_s=tile_s)
    grid_spec = pltpu.PrefetchScalarGridSpec(
        num_scalar_prefetch=1,                  # seed lives in SMEM, zero per-step DMA
        grid=grid,
        in_specs=[x_spec, pe_spec],
        out_specs=out_spec,
    )
    return pl.pallas_call(
        kernel,
        out_shape=jax.ShapeDtypeStruct((S, B, D), x.dtype),
        grid_spec=grid_spec,
        compiler_params=compiler_params,
    )(seed_arr, x, pe)


# ----------------------------------------------------------------------------
# Demo / self-test
# ----------------------------------------------------------------------------
if __name__ == "__main__":
    # Case 1: small PyTorch-convention shapes (S, B, D) = (8, 2, 32).
    S, B, D = 8, 2, 32
    pe_table = make_pe_table(D, max_len=64)
    x = jax.random.normal(jax.random.PRNGKey(0), (S, B, D), dtype=jnp.float32)

    # eval-mode forward (dropout is identity) -- deterministic, check vs reference
    y = jax.block_until_ready(positional_encoding(x, pe_table, p=0.1, training=False))
    ref = x + pe_table[:S]
    assert jnp.allclose(y, ref, atol=1e-6), "eval-path mismatch vs reference"

    # training-mode forward (dropout applied inside the kernel)
    y_train = jax.block_until_ready(
        positional_encoding(x, pe_table, p=0.1, training=True, seed=123)
    )
    assert y_train.shape == (S, B, D)
    assert bool(jnp.all(jnp.isfinite(y_train)))
    # every output element must be either 0 (dropped) or (x+pe)/(1-p) (kept)
    scaled = ref / (1.0 - 0.1)
    valid = jnp.isclose(y_train, 0.0) | jnp.isclose(y_train, scaled, rtol=1e-5, atol=1e-5)
    assert bool(jnp.all(valid)), "training-path values are not a valid dropout of (x+pe)"

    # Case 2: lane/sublane-dense layout with a real multi-tile grid over S.
    S2, B2, D2 = 64, 8, 128
    pe2 = make_pe_table(D2, max_len=128)
    x2 = jax.random.normal(jax.random.PRNGKey(1), (S2, B2, D2), dtype=jnp.float32)
    y2 = jax.block_until_ready(
        positional_encoding(x2, pe2, p=0.1, training=False, tile_s=16)
    )
    assert jnp.allclose(y2, x2 + pe2[:S2], atol=1e-6), "tiled eval-path mismatch"

    print("KERNEL_OK")
</pallas_src>

<mosaic_0001>
module attributes {stable_mosaic.version = 11 : i64} {
  func.func @_pe_add_kernel(%arg0: i32, %arg1: memref<8x2x32xf32, #tpu.memory_space<vmem>>, %arg2: memref<8x1x32xf32, #tpu.memory_space<vmem>>, %arg3: memref<8x2x32xf32, #tpu.memory_space<vmem>>) attributes {dimension_semantics = [#tpu.dimension_semantics<parallel>], iteration_bounds = array<i64: 1>, scalar_prefetch = 0 : i64, scratch_operands = 0 : i64, tpu.core_type = #tpu.core_type<tc>, window_params = [{transform_indices = @transform_0, window_bounds = array<i64: 8, 2, 32>}, {transform_indices = @transform_1, window_bounds = array<i64: 8, 1, 32>}, {transform_indices = @transform_2, window_bounds = array<i64: 8, 2, 32>}]} {
    %c0 = arith.constant 0 : index
    %c0_0 = arith.constant 0 : index
    %c0_1 = arith.constant 0 : index
    %0 = vector.load %arg1[%c0, %c0_0, %c0_1] : memref<8x2x32xf32, #tpu.memory_space<vmem>>, vector<8x2x32xf32>
    %c0_2 = arith.constant 0 : index
    %c0_3 = arith.constant 0 : index
    %c0_4 = arith.constant 0 : index
    %1 = vector.load %arg2[%c0_2, %c0_3, %c0_4] : memref<8x1x32xf32, #tpu.memory_space<vmem>>, vector<8x1x32xf32>
    %2 = vector.broadcast %1 : vector<8x1x32xf32> to vector<8x2x32xf32>
    %3 = arith.addf %0, %2 : vector<8x2x32xf32>
    %c0_5 = arith.constant 0 : index
    %c0_6 = arith.constant 0 : index
    %c0_7 = arith.constant 0 : index
    %4 = vector.load %arg3[%c0_5, %c0_6, %c0_7] : memref<8x2x32xf32, #tpu.memory_space<vmem>>, vector<8x2x32xf32>
    tpu.vector_store %arg3[%c0_5, %c0_6, %c0_7], %3 {strides = array<i32>} : memref<8x2x32xf32, #tpu.memory_space<vmem>>, vector<8x2x32xf32>,
    return
  }
  func.func @transform_0(%arg0: i32) -> (i32, i32, i32) {
    %c0_i32 = arith.constant 0 : i32
    %c0_i32_0 = arith.constant 0 : i32
    %c0_i32_1 = arith.constant 0 : i32
    return %arg0, %c0_i32, %c0_i32_0 : i32, i32, i32
  }
  func.func @transform_1(%arg0: i32) -> (i32, i32, i32) {
    %c0_i32 = arith.constant 0 : i32
    %c0_i32_0 = arith.constant 0 : i32
    %c0_i32_1 = arith.constant 0 : i32
    return %arg0, %c0_i32, %c0_i32_0 : i32, i32, i32
  }
  func.func @transform_2(%arg0: i32) -> (i32, i32, i32) {
    %c0_i32 = arith.constant 0 : i32
    %c0_i32_0 = arith.constant 0 : i32
    %c0_i32_1 = arith.constant 0 : i32
    return %arg0, %c0_i32, %c0_i32_0 : i32, i32, i32
  }
}

</mosaic_0001>

<llo_original>
// kernel: tpu_custom_call.1
$region0: #{tpu_custom_call.1}
  #allocation0 [shape = 'u32[]', space=smem, size = 0x4, offset = 0x4, fixed_abs, tag = 'smem constant byte address 0x4 - core index']
  #allocation1 [shape = 'u32[72,128]{1,0:T(1,128)}', space=vmem, size = 0x9000, scoped, tag = 'internal scratch']
  %s0 = inlined_call_operand.hbm [shape: f32[8,2,32], index: 0, kind: input, shape index: {}]
  %s1 = inlined_call_operand.hbm [shape: f32[8,1,32], index: 1, kind: input, shape index: {}]
  %s2 = inlined_call_operand.hbm [shape: f32[8,2,32], index: 2, kind: output, shape index: {}]
  %s3 = sld [smem:[#allocation0]]
  $region26: #{tpu_custom_call.1} parent=0
    _
  %s5 = ssub.s32 1, %s3
  %s6 = scalar_select 0, %s5, %s3
  $region1: #{tpu_custom_call.1} parent=0
    #allocation2 [shape = 'u8[8192]{0}', space=vmem, size = 0x2000, scoped, tag = 'input window, operand 0, single buffered']
    #allocation3 [shape = 's32[1]{0}', space=sflag, size = 0x4, scoped, tag = 'scoped memory for tpu_custom_call.1']
    #allocation4 [shape = 's32[1]{0}', space=sflag, size = 0x4, scoped, tag = 'scoped memory for tpu_custom_call.1']
    #allocation5 [shape = 'u8[4096]{0}', space=vmem, size = 0x1000, scoped, tag = 'input window, operand 1, single buffered']
    #allocation6 [shape = 's32[1]{0}', space=sflag, size = 0x4, scoped, tag = 'scoped memory for tpu_custom_call.1']
    #allocation7 [shape = 'u8[8192]{0}', space=vmem, size = 0x2000, scoped, tag = 'output window, operand 0, single buffered']
    %7 = vsyncpa [#allocation3], 0
    %8 = vsyncpa [#allocation6], 0
    %9 = vsyncpa [#allocation4], 0
    // Predicated region
    $region2: #{tpu_custom_call.1} parent=1 // pred_check
      _
    $region3: #{tpu_custom_call.1} parent=1 // pred_check_branch
      %11 = sbr.rel (0) target = $region5
    $region4: #{tpu_custom_call.1} parent=1 // pred_region
      %13 = vsyncadd [#allocation3], 0
      %s14 = sshll.u32 %s0, 4
      %s15 = int_to_ptr.hbm [resolvable:$true] %s14
      %s16 = sshll.u32 [#allocation2], 4
      %s17 = int_to_ptr.vmem [resolvable:$true] %s16
      %22 = dma.hbm_to_vmem [thread:$0]  %s15, 256, %s17, [#allocation3], 32, 32, 2
    $region5: #{tpu_custom_call.1} parent=1 // pred_fallthru
      _
    // Predicated region
    $region6: #{tpu_custom_call.1} parent=1 // pred_check
      _
    $region7: #{tpu_custom_call.1} parent=1 // pred_check_branch
      %24 = sbr.rel (0) target = $region9
    $region8: #{tpu_custom_call.1} parent=1 // pred_region
      %26 = vsyncadd [#allocation6], 0
      %s27 = sshll.u32 %s1, 4
      %s28 = int_to_ptr.hbm [resolvable:$true] %s27
      %s29 = sshll.u32 [#allocation5], 4
      %s30 = int_to_ptr.vmem [resolvable:$true] %s29
      %35 = dma.hbm_to_vmem [thread:$0]  %s28, 128, %s30, [#allocation6], 16, 16, 1
    $region9: #{tpu_custom_call.1} parent=1 // pred_fallthru
      _
    // Predicated region
    $region10: #{tpu_custom_call.1} parent=1 // pred_check
      _
    $region11: #{tpu_custom_call.1} parent=1 // pred_check_branch
      %37 = sbr.rel (0) target = $region13
    $region12: #{tpu_custom_call.1} parent=1 // pred_region
      %39 = dma.done [#allocation3], 256
    $region13: #{tpu_custom_call.1} parent=1 // pred_fallthru
      _
    // Predicated region
    $region14: #{tpu_custom_call.1} parent=1 // pred_check
      _
    $region15: #{tpu_custom_call.1} parent=1 // pred_check_branch
      %41 = sbr.rel (0) target = $region17
    $region16: #{tpu_custom_call.1} parent=1 // pred_region
      %43 = dma.done [#allocation6], 128
    $region17: #{tpu_custom_call.1} parent=1 // pred_fallthru
      _
    %v44 = vld [vmem:[#allocation2] sm:$0x3]
    %v45 = vld [vmem:[#allocation2 + $0x2] sm:$0x3]
    %v46 = vld [vmem:[#allocation2 + $0x4] sm:$0x3]
    %v47 = vld [vmem:[#allocation2 + $0x6] sm:$0x3]
    %v48 = vld [vmem:[#allocation2 + $0x8] sm:$0x3]
    %v49 = vld [vmem:[#allocation2 + $0xa] sm:$0x3]
    %v50 = vld [vmem:[#allocation2 + $0xc] sm:$0x3]
    %v51 = vld [vmem:[#allocation2 + $0xe] sm:$0x3]
    %v52 = vld [vmem:[#allocation5] sm:$0x1]
    %v53 = vld [vmem:[#allocation5 + $0x1] sm:$0x1]
    %v54 = vld [vmem:[#allocation5 + $0x2] sm:$0x1]
    %v55 = vld [vmem:[#allocation5 + $0x3] sm:$0x1]
    %v56 = vld [vmem:[#allocation5 + $0x4] sm:$0x1]
    %v57 = vld [vmem:[#allocation5 + $0x5] sm:$0x1]
    %v58 = vld [vmem:[#allocation5 + $0x6] sm:$0x1]
    %v59 = vld [vmem:[#allocation5 + $0x7] sm:$0x1]
    %v68 = vperm.slane %v52, 0
    %v69 = vperm.slane %v53, 0
    %v70 = vperm.slane %v54, 0
    %v71 = vperm.slane %v55, 0
    %v72 = vperm.slane %v56, 0
    %v73 = vperm.slane %v57, 0
    %v74 = vperm.slane %v58, 0
    %v75 = vperm.slane %v59, 0
    %v84 = vadd.f32 %v44, %v68
    %v85 = vadd.f32 %v45, %v69
    %v86 = vadd.f32 %v46, %v70
    %v87 = vadd.f32 %v47, %v71
    %v88 = vadd.f32 %v48, %v72
    %v89 = vadd.f32 %v49, %v73
    %v90 = vadd.f32 %v50, %v74
    %v91 = vadd.f32 %v51, %v75
    %vm92 = vcmask 254976
    %93 = vst.msk [vmem:[#allocation7] sm:$0x3] %vm92, %v84
    %94 = vst.msk [vmem:[#allocation7 + $0x2] sm:$0x3] %vm92, %v85
    %95 = vst.msk [vmem:[#allocation7 + $0x4] sm:$0x3] %vm92, %v86
    %96 = vst.msk [vmem:[#allocation7 + $0x6] sm:$0x3] %vm92, %v87
    %97 = vst.msk [vmem:[#allocation7 + $0x8] sm:$0x3] %vm92, %v88
    %98 = vst.msk [vmem:[#allocation7 + $0xa] sm:$0x3] %vm92, %v89
    %99 = vst.msk [vmem:[#allocation7 + $0xc] sm:$0x3] %vm92, %v90
    %100 = vst.msk [vmem:[#allocation7 + $0xe] sm:$0x3] %vm92, %v91
    // Predicated region
    $region18: #{tpu_custom_call.1} parent=1 // pred_check
      _
    $region19: #{tpu_custom_call.1} parent=1 // pred_check_branch
      %102 = sbr.rel (0) target = $region21
    $region20: #{tpu_custom_call.1} parent=1 // pred_region
      %104 = vsyncadd [#allocation4], 0
      %s105 = sshll.u32 [#allocation7], 4
      %s106 = int_to_ptr.vmem [resolvable:$true] %s105
      %s107 = sshll.u32 %s2, 4
      %s108 = int_to_ptr.hbm [resolvable:$true] %s107
      %113 = dma.vmem_to_hbm [thread:$0]  %s106, 256, %s108, [#allocation4], 32, 32, 2
    $region21: #{tpu_custom_call.1} parent=1 // pred_fallthru
      _
    // Predicated region
    $region22: #{tpu_custom_call.1} parent=1 // pred_check
      _
    $region23: #{tpu_custom_call.1} parent=1 // pred_check_branch
      %115 = sbr.rel (0) target = $region25
    $region24: #{tpu_custom_call.1} parent=1 // pred_region
      %117 = dma.done [#allocation4], 256
    $region25: #{tpu_custom_call.1} parent=1 // pred_fallthru
      _
    %118 = vsyncpa [#allocation3], 1
    %119 = vsyncpa [#allocation6], 1
    %120 = vsyncpa [#allocation4], 1

</llo_original>
